<compile_context>
chip_gen: v7x
topology: tpu7x:2x2x1
jax: 0.10.0
libtpu: 0.0.40
codegen_flags: <defaults>
</compile_context>

<pallas_src>
import jax
import jax.numpy as jnp
from jax.experimental import pallas as pl
from jax.experimental.pallas import tpu as pltpu

_LANE_CANDIDATES = (2048, 1024, 512, 256, 128)
_MAX_BLOCK_BYTES = 4 * 1024 * 1024  # per-block budget; 4x this (double-buffered
                                    # in + out) fits scoped VMEM on v5e/v6e/v7x


def _copy_kernel(x_ref, o_ref):
    # Pure copy: the binding resource is HBM/DMA bandwidth; keep the VLIW body
    # to a single vld/vst.
    o_ref[...] = x_ref[...]


def _sublane_pack(dtype):
    """Rows per vreg for the dtype: 8 (f32), 16 (bf16), 32 (int8/fp8)."""
    itemsize = jnp.dtype(dtype).itemsize
    if itemsize in (1, 2, 4):
        return 8 * (4 // itemsize)
    return 8


def _choose_lane_tile(total, pack):
    """Largest lane width (multiple of 128) dividing `total`, preferring one
    that leaves a sublane-pack-aligned row count. None if 128 doesn't divide."""
    best_any = None
    for lane in _LANE_CANDIDATES:
        if total % lane == 0:
            if best_any is None:
                best_any = lane
            if (total // lane) % pack == 0:
                return lane
    return best_any


def _choose_row_tile(rows, pack, lane, itemsize):
    """Largest pack-multiple divisor of `rows` within the block byte budget."""
    max_rows = min(rows, max(1, _MAX_BLOCK_BYTES // (lane * itemsize)))
    best = None
    t = pack
    while t <= max_rows:
        if rows % t == 0:
            best = t
        t += pack
    return best


def flatten_pallas(x):
    """Pallas equivalent of PyTorch `input.view(input.size(0), -1)`."""
    n = x.shape[0]
    f = 1
    for d in x.shape[1:]:
        f *= d
    total = n * f
    itemsize = jnp.dtype(x.dtype).itemsize
    pack = _sublane_pack(x.dtype)

    # ---- Path 1: lane-dense retiled copy, decoupled from (n, f). -----------
    lane = _choose_lane_tile(total, pack)
    if lane is not None:
        rows = total // lane
        tr = _choose_row_tile(rows, pack, lane, itemsize)
        if tr is None and rows * lane * itemsize <= _MAX_BLOCK_BYTES:
            tr = rows  # full-extent block: always legal w.r.t. (8,128) rule
        if tr is not None:
            # Expose >=2 parallel grid steps (v7x megacore) when cheaply possible.
            if rows // tr == 1 and tr % (2 * pack) == 0:
                tr //= 2

            x2 = jnp.reshape(x, (rows, lane))  # metadata-only retile
            block_bytes = tr * lane * itemsize
            # Double-buffered in + out footprint + headroom; capped for v7x.
            vmem_limit = min(48 * 1024 * 1024,
                             max(32 * 1024 * 1024,
                                 4 * block_bytes + 4 * 1024 * 1024))

            out = pl.pallas_call(
                _copy_kernel,
                out_shape=jax.ShapeDtypeStruct((rows, lane), x.dtype),
                grid_spec=pltpu.PrefetchScalarGridSpec(
                    num_scalar_prefetch=0,
                    grid=(rows // tr,),
                    in_specs=[pl.BlockSpec((tr, lane), lambda i: (i, 0))],
                    out_specs=pl.BlockSpec((tr, lane), lambda i: (i, 0)),
                ),
                compiler_params=pltpu.CompilerParams(
                    dimension_semantics=("parallel",),
                    vmem_limit_bytes=vmem_limit,
                ),
                cost_estimate=pl.CostEstimate(
                    flops=0,
                    transcendentals=0,
                    bytes_accessed=2 * total * itemsize,
                ),
            )(x2)
            return jnp.reshape(out, (n, f))  # metadata-only

    # ---- Path 2: not expressible as a lane-dense slab within budget. -------
    # Flatten is a pure view; the metadata-only reshape is the optimal (and
    # review-preferred) implementation, so use it rather than emitting a
    # masked / VMEM-unsafe copy.
    # TODO(synk): masked-tile Pallas copy for totals not divisible by 128.
    return jnp.reshape(x, (n, f))


if __name__ == "__main__":
    key = jax.random.PRNGKey(0)
    # LeNet-style conv feature map: N=2, C=4, 16x16.
    x = jax.random.normal(key, (2, 4, 16, 16), dtype=jnp.float32)

    out = jax.block_until_ready(flatten_pallas(x))

    # Reference: pure XLA reshape (what PyTorch .view(N, -1) computes).
    ref = jnp.reshape(x, (x.shape[0], -1))

    assert out.shape == (2, 4 * 16 * 16), out.shape
    if not bool(jnp.array_equal(out, ref)):
        raise AssertionError("Pallas flatten does not match reference reshape")

    print("KERNEL_OK")
</pallas_src>

<mosaic_0001>
module attributes {stable_mosaic.version = 11 : i64} {
  func.func @_copy_kernel(%arg0: i32, %arg1: memref<8x256xf32, #tpu.memory_space<vmem>>, %arg2: memref<8x256xf32, #tpu.memory_space<vmem>>) attributes {dimension_semantics = [#tpu.dimension_semantics<parallel>], iteration_bounds = array<i64: 1>, scalar_prefetch = 0 : i64, scratch_operands = 0 : i64, tpu.core_type = #tpu.core_type<tc>, window_params = [{transform_indices = @transform_0, window_bounds = array<i64: 8, 256>}, {transform_indices = @transform_1, window_bounds = array<i64: 8, 256>}]} {
    %c0 = arith.constant 0 : index
    %c0_0 = arith.constant 0 : index
    %0 = vector.load %arg1[%c0, %c0_0] : memref<8x256xf32, #tpu.memory_space<vmem>>, vector<8x256xf32>
    %c0_1 = arith.constant 0 : index
    %c0_2 = arith.constant 0 : index
    %1 = vector.load %arg2[%c0_1, %c0_2] : memref<8x256xf32, #tpu.memory_space<vmem>>, vector<8x256xf32>
    tpu.vector_store %arg2[%c0_1, %c0_2], %0 {strides = array<i32>} : memref<8x256xf32, #tpu.memory_space<vmem>>, vector<8x256xf32>,
    return
  }
  func.func @transform_0(%arg0: i32) -> (i32, i32) {
    %c0_i32 = arith.constant 0 : i32
    %c0_i32_0 = arith.constant 0 : i32
    return %arg0, %c0_i32 : i32, i32
  }
  func.func @transform_1(%arg0: i32) -> (i32, i32) {
    %c0_i32 = arith.constant 0 : i32
    %c0_i32_0 = arith.constant 0 : i32
    return %arg0, %c0_i32 : i32, i32
  }
}

</mosaic_0001>

<llo_original>
// kernel: tpu_custom_call.1
$region0: #{tpu_custom_call.1}
  #allocation0 [shape = 'u32[]', space=smem, size = 0x4, offset = 0x4, fixed_abs, tag = 'smem constant byte address 0x4 - core index']
  #allocation1 [shape = 'u32[144,128]{1,0:T(1,128)}', space=vmem, size = 0x12000, scoped, tag = 'internal scratch']
  %s0 = inlined_call_operand.hbm [shape: f32[8,256], index: 0, kind: input, shape index: {}]
  %s1 = inlined_call_operand.hbm [shape: f32[8,256], index: 1, kind: output, shape index: {}]
  %s2 = sld [smem:[#allocation0]]
  $region18: #{tpu_custom_call.1} parent=0
    _
  %s4 = ssub.s32 1, %s2
  %s5 = scalar_select 0, %s4, %s2
  $region1: #{tpu_custom_call.1} parent=0
    #allocation2 [shape = 'u8[8192]{0}', space=vmem, size = 0x2000, scoped, tag = 'input window, operand 0, single buffered']
    #allocation3 [shape = 's32[1]{0}', space=sflag, size = 0x4, scoped, tag = 'scoped memory for tpu_custom_call.1']
    #allocation4 [shape = 's32[1]{0}', space=sflag, size = 0x4, scoped, tag = 'scoped memory for tpu_custom_call.1']
    #allocation5 [shape = 'u8[8192]{0}', space=vmem, size = 0x2000, scoped, tag = 'output window, operand 0, single buffered']
    %6 = vsyncpa [#allocation3], 0
    %7 = vsyncpa [#allocation4], 0
    // Predicated region
    $region2: #{tpu_custom_call.1} parent=1 // pred_check
      _
    $region3: #{tpu_custom_call.1} parent=1 // pred_check_branch
      %9 = sbr.rel (0) target = $region5
    $region4: #{tpu_custom_call.1} parent=1 // pred_region
      %s11 = ssub.s32 256, 256
      %12 = vsyncadd [#allocation3], %s11
      %s14 = sshll.u32 [#allocation2], 4
      %s15 = int_to_ptr.vmem [resolvable:$true] %s14
      %17 = dma.hbm_to_vmem [thread:$0]  %s0, 256, %s15, [#allocation3]
    $region5: #{tpu_custom_call.1} parent=1 // pred_fallthru
      _
    // Predicated region
    $region6: #{tpu_custom_call.1} parent=1 // pred_check
      _
    $region7: #{tpu_custom_call.1} parent=1 // pred_check_branch
      %19 = sbr.rel (0) target = $region9
    $region8: #{tpu_custom_call.1} parent=1 // pred_region
      %20 = dma.done [#allocation3], 256
    $region9: #{tpu_custom_call.1} parent=1 // pred_fallthru
      _
    %v21 = vld [vmem:[#allocation2] sm:$0xff]
    %v22 = vld [vmem:[#allocation2 + $0x8] sm:$0xff]
    %23 = vst [vmem:[#allocation5] sm:$0xff] %v21
    %24 = vst [vmem:[#allocation5 + $0x8] sm:$0xff] %v22
    // Predicated region
    $region10: #{tpu_custom_call.1} parent=1 // pred_check
      _
    $region11: #{tpu_custom_call.1} parent=1 // pred_check_branch
      %26 = sbr.rel (0) target = $region13
    $region12: #{tpu_custom_call.1} parent=1 // pred_region
      %s28 = ssub.s32 256, 256
      %29 = vsyncadd [#allocation4], %s28
      %s31 = sshll.u32 [#allocation5], 4
      %s32 = int_to_ptr.vmem [resolvable:$true] %s31
      %34 = dma.vmem_to_hbm [thread:$0]  %s32, 256, %s1, [#allocation4]
    $region13: #{tpu_custom_call.1} parent=1 // pred_fallthru
      _
    // Predicated region
    $region14: #{tpu_custom_call.1} parent=1 // pred_check
      _
    $region15: #{tpu_custom_call.1} parent=1 // pred_check_branch
      %36 = sbr.rel (0) target = $region17
    $region16: #{tpu_custom_call.1} parent=1 // pred_region
      %37 = dma.done [#allocation4], 256
    $region17: #{tpu_custom_call.1} parent=1 // pred_fallthru
      _
    %38 = vsyncpa [#allocation3], 1
    %39 = vsyncpa [#allocation4], 1

</llo_original>
